<compile_context>
chip_gen: v5e
topology: v5e:2x2
jax: 0.10.0
libtpu: 0.0.40
codegen_flags: <defaults>
</compile_context>

<pallas_src>
import functools
import math

import jax
import jax.numpy as jnp
from jax.experimental import pallas as pl
from jax.experimental.pallas import tpu as pltpu


def _round_up(x, m):
    return (x + m - 1) // m * m


def _rnn_seq_kernel(zx_ref, wh_ref, out_ref, h_scr, *,
                    hidden_size, hidden_pad, valid_batch, block_t, compute_dtype):
    """Run `block_t` timesteps of the recurrence per grid iteration.

    zx_ref : (Tb, Bp, Np)  precomputed x_t @ Wx + b  (h0 @ Wh folded into t==0)
    wh_ref : (Hp, Np)      recurrent weight (rows >= H are zero), resident
    out_ref: (Tb, Bp, Np)  cols [0,H) = new hidden, [H,H+O) = log_softmax output
    h_scr  : (Bp, Hp)      carried hidden state, full lane width, f32
    """
    @pl.when(pl.program_id(0) == 0)
    def _():
        # h0's contribution is pre-folded into zx[0]; start the carry at zero.
        h_scr[...] = jnp.zeros_like(h_scr)

    wh = wh_ref[...]

    def step(i, carry):
        h = h_scr[...]                                        # (Bp, Hp) f32
        z = zx_ref[i] + jnp.dot(h.astype(compute_dtype), wh,
                                preferred_element_type=jnp.float32)   # (Bp, Np)

        # Carry the new hidden state: first Hp columns (Hp % 128 == 0 -> unmasked
        # full-vreg store).  Columns >= H hold logits/padding but are killed by
        # the zero rows of wh on the next step.
        h_scr[...] = z[:, :hidden_pad]

        # LogSoftmax over dim=0 (the batch dim), masking padded batch rows out of
        # the statistics (mask the shifted logits, not the exp result).
        row = jax.lax.broadcasted_iota(jnp.int32, z.shape, 0)
        zm = jnp.where(row < valid_batch, z, -jnp.inf)
        m = jnp.max(zm, axis=0, keepdims=True)
        lse = jnp.log(jnp.sum(jnp.exp(zm - m), axis=0, keepdims=True))
        logsm = (z - m) - lse                                 # (Bp, Np)

        # Single lane-dense store: hidden in cols [0,H), log-softmax in [H,Np).
        lane = jax.lax.broadcasted_iota(jnp.int32, z.shape, 1)
        out_ref[i] = jnp.where(lane < hidden_size, z, logsm).astype(out_ref.dtype)
        return carry

    jax.lax.fori_loop(0, block_t, step, 0, unroll=True)


def rnn_sequence(xs, h0, w_i2h, b_i2h, w_i2o, b_i2o, *,
                 block_t=32, compute_dtype=jnp.bfloat16, out_dtype=jnp.float32):
    """Run the RNN cell over a whole sequence with one recurrent pallas_call.

    xs: (T, B, input_size), h0: (B, hidden_size)
    w_i2h: (input_size+hidden_size, hidden_size)   (transposed vs torch)
    b_i2h: (hidden_size,)
    w_i2o: (input_size+hidden_size, output_size)   (transposed vs torch)
    b_i2o: (output_size,)
    Returns (outputs, hiddens):
      outputs: (T, B, output_size)  log_softmax(i2o(combined), dim=0) per step
      hiddens: (T, B, hidden_size)  hidden state after each step
    """
    T, B, I = xs.shape
    H = h0.shape[1]
    O = w_i2o.shape[1]
    assert B >= 1 and T >= 1, "batch and sequence length must be >= 1"
    N = H + O
    Bp = _round_up(B, 8)                 # f32 sublane multiple
    Np = _round_up(N, 128)               # lane-dense fused output width
    Hp = _round_up(H, 128)               # full-lane-width recurrent carry (Hp <= Np)
    Tb = max(1, min(block_t, T))         # timesteps per grid iteration
    Tp = _round_up(T, Tb)

    f32 = jnp.float32
    hi = jax.lax.Precision.HIGHEST

    # Recurrent weight, padded to (Hp, Np); rows >= H are zero so the padded
    # columns carried in h_scr never contaminate the recurrence.
    wh = jnp.zeros((Hp, Np), f32).at[:H, :H].set(w_i2h[I:].astype(f32))
    wh = wh.at[:H, H:N].set(w_i2o[I:].astype(f32))
    wh_c = wh.astype(compute_dtype)

    # Non-recurrent projection hoisted out of the serial loop:
    #   zx[t] = x_t @ Wx + b, one bulk matmul over all timesteps at once.
    wx = jnp.zeros((I, Np), f32).at[:, :H].set(w_i2h[:I].astype(f32))
    wx = wx.at[:, H:N].set(w_i2o[:I].astype(f32))
    b = jnp.zeros((Np,), f32).at[:H].set(b_i2h.astype(f32)).at[H:N].set(b_i2o.astype(f32))

    xs_p = jnp.zeros((Tp, Bp, I), f32).at[:T, :B, :].set(xs.astype(f32))
    zx = jnp.einsum('tbi,in->tbn',
                    xs_p.astype(compute_dtype), wx.astype(compute_dtype),
                    precision=hi, preferred_element_type=f32) + b

    # Fold h0's one-off contribution into the first timestep so the kernel needs
    # no resident h0 input and the carry starts at zero.
    h0_p = jnp.zeros((Bp, Hp), f32).at[:B, :H].set(h0.astype(f32))
    zx = zx.at[0].add(jnp.dot(h0_p.astype(compute_dtype), wh_c,
                              precision=hi, preferred_element_type=f32))

    kernel = functools.partial(
        _rnn_seq_kernel, hidden_size=H, hidden_pad=Hp, valid_batch=B,
        block_t=Tb, compute_dtype=compute_dtype)

    out = pl.pallas_call(
        kernel,
        out_shape=jax.ShapeDtypeStruct((Tp, Bp, Np), out_dtype),
        grid_spec=pltpu.PrefetchScalarGridSpec(
            num_scalar_prefetch=0,
            grid=(Tp // Tb,),
            in_specs=[
                pl.BlockSpec((Tb, Bp, Np), lambda t: (t, 0, 0)),   # zx time-block
                pl.BlockSpec((Hp, Np), lambda t: (0, 0)),          # Wh (resident)
            ],
            out_specs=pl.BlockSpec((Tb, Bp, Np), lambda t: (t, 0, 0)),
            scratch_shapes=[pltpu.VMEM((Bp, Hp), jnp.float32)],    # carried hidden
        ),
        compiler_params=pltpu.CompilerParams(
            dimension_semantics=("arbitrary",),     # time axis is a recurrence
            vmem_limit_bytes=32 * 1024 * 1024,      # safe on v5e/v6e/v7x
        ),
    )(zx, wh_c)

    hiddens = out[:T, :B, :H].astype(jnp.float32)
    outputs = out[:T, :B, H:N].astype(jnp.float32)
    return outputs, hiddens


def rnn_forward(x, h, w_i2h, b_i2h, w_i2o, b_i2o, **kwargs):
    """Single-step forward matching the PyTorch module's forward(input, hidden)."""
    outputs, hiddens = rnn_sequence(x[None], h, w_i2h, b_i2h, w_i2o, b_i2o, **kwargs)
    return outputs[0], hiddens[0]


def init_params(key, input_size, hidden_size, output_size):
    """nn.Linear-style init: U(-1/sqrt(fan_in), 1/sqrt(fan_in)); weights pre-transposed."""
    fan_in = input_size + hidden_size
    bound = 1.0 / math.sqrt(fan_in)
    k1, k2, k3, k4 = jax.random.split(key, 4)
    w_i2h = jax.random.uniform(k1, (fan_in, hidden_size), jnp.float32, -bound, bound)
    b_i2h = jax.random.uniform(k2, (hidden_size,), jnp.float32, -bound, bound)
    w_i2o = jax.random.uniform(k3, (fan_in, output_size), jnp.float32, -bound, bound)
    b_i2o = jax.random.uniform(k4, (output_size,), jnp.float32, -bound, bound)
    return w_i2h, b_i2h, w_i2o, b_i2o


if __name__ == "__main__":
    input_size, hidden_size, output_size = 16, 32, 8
    batch, seq_len = 2, 8

    key = jax.random.PRNGKey(0)
    kp, kx = jax.random.split(key, 2)

    w_i2h, b_i2h, w_i2o, b_i2o = init_params(kp, input_size, hidden_size, output_size)

    xs = jax.random.normal(kx, (seq_len, batch, input_size), jnp.float32)
    h0 = jnp.zeros((batch, hidden_size), jnp.float32)   # initHidden()

    # Pure-JAX reference (step-by-step, identical to the PyTorch forward).
    hi = jax.lax.Precision.HIGHEST

    def ref_step(h, x):
        combined = jnp.concatenate([x, h], axis=1)
        hid = jnp.dot(combined, w_i2h, precision=hi) + b_i2h
        logits = jnp.dot(combined, w_i2o, precision=hi) + b_i2o
        out = jax.nn.log_softmax(logits, axis=0)   # dim=0 as in the module
        return hid, (out, hid)

    _, (outs_ref, hids_ref) = jax.lax.scan(ref_step, h0, xs)

    # f32 MXU path: should match the reference tightly.
    outs, hids = rnn_sequence(xs, h0, w_i2h, b_i2h, w_i2o, b_i2o,
                              compute_dtype=jnp.float32)
    jax.block_until_ready((outs, hids))
    assert jnp.allclose(outs, outs_ref, atol=1e-4), "f32 sequence output mismatch"
    assert jnp.allclose(hids, hids_ref, atol=1e-4), "f32 sequence hidden mismatch"

    # bf16 MXU-operand path (production default, f32 accumulation): sanity check.
    outs_bf, hids_bf = rnn_sequence(xs, h0, w_i2h, b_i2h, w_i2o, b_i2o)
    jax.block_until_ready((outs_bf, hids_bf))
    assert jnp.allclose(outs_bf, outs_ref, atol=3e-2), "bf16 sequence output mismatch"
    assert jnp.allclose(hids_bf, hids_ref, atol=3e-2), "bf16 sequence hidden mismatch"

    # Single-step forward (exact module semantics).
    out1, h1 = rnn_forward(xs[0], h0, w_i2h, b_i2h, w_i2o, b_i2o,
                           compute_dtype=jnp.float32)
    jax.block_until_ready((out1, h1))
    assert jnp.allclose(out1, outs_ref[0], atol=1e-4), "step output mismatch"
    assert jnp.allclose(h1, hids_ref[0], atol=1e-4), "step hidden mismatch"

    print("KERNEL_OK")
</pallas_src>

<mosaic_0001>
module attributes {stable_mosaic.version = 11 : i64} {
  func.func @_rnn_seq_kernel(%arg0: i32, %arg1: memref<8x8x128xf32, #tpu.memory_space<vmem>>, %arg2: memref<128x128xf32, #tpu.memory_space<vmem>>, %arg3: memref<8x8x128xf32, #tpu.memory_space<vmem>>, %arg4: memref<8x128xf32, #tpu.memory_space<vmem>>) attributes {dimension_semantics = [#tpu.dimension_semantics<arbitrary>], iteration_bounds = array<i64: 1>, scalar_prefetch = 0 : i64, scratch_operands = 1 : i64, tpu.core_type = #tpu.core_type<tc>, window_params = [{transform_indices = @transform_0, window_bounds = array<i64: 8, 8, 128>}, {pipeline_mode = #tpu.pipeline_mode<synchronous>, transform_indices = @transform_1, window_bounds = array<i64: 128, 128>}, {transform_indices = @transform_2, window_bounds = array<i64: 8, 8, 128>}]} {
    %c0_i32 = arith.constant 0 : i32
    %0 = arith.cmpi eq, %arg0, %c0_i32 : i32
    %1 = arith.extui %0 : i1 to i32
    %c0_i32_0 = arith.constant 0 : i32
    %2 = arith.cmpi ne, %1, %c0_i32_0 : i32
    scf.if %2 {
      %cst_113 = arith.constant 0.000000e+00 : f32
      %260 = vector.broadcast %cst_113 : f32 to vector<8x128xf32>
      %c0_114 = arith.constant 0 : index
      %c0_115 = arith.constant 0 : index
      %261 = vector.load %arg4[%c0_114, %c0_115] : memref<8x128xf32, #tpu.memory_space<vmem>>, vector<8x128xf32>
      tpu.vector_store %arg4[%c0_114, %c0_115], %260 {strides = array<i32>} : memref<8x128xf32, #tpu.memory_space<vmem>>, vector<8x128xf32>,
    } else {
    }
    %c0 = arith.constant 0 : index
    %c0_1 = arith.constant 0 : index
    %3 = vector.load %arg2[%c0, %c0_1] : memref<128x128xf32, #tpu.memory_space<vmem>>, vector<128x128xf32>
    %c0_i32_2 = arith.constant 0 : i32
    %c0_3 = arith.constant 0 : index
    %c0_4 = arith.constant 0 : index
    %4 = vector.load %arg4[%c0_3, %c0_4] : memref<8x128xf32, #tpu.memory_space<vmem>>, vector<8x128xf32>
    %5 = arith.index_cast %c0_i32_2 : i32 to index
    %c0_5 = arith.constant 0 : index
    %c0_6 = arith.constant 0 : index
    %6 = vector.load %arg1[%5, %c0_5, %c0_6] : memref<8x8x128xf32, #tpu.memory_space<vmem>>, vector<1x8x128xf32>
    %7 = vector.shape_cast %6 : vector<1x8x128xf32> to vector<8x128xf32>
    %cst = arith.constant dense<0.000000e+00> : vector<8x128xf32>
    %8 = tpu.matmul %4, %3, %cst {dimension_numbers = #tpu.dot_dimension_numbers<[1], [0], [0], [1], [0, 0, 1, 1], [], []>} : vector<8x128xf32>, vector<128x128xf32>, vector<8x128xf32> -> vector<8x128xf32>
    %9 = arith.addf %7, %8 : vector<8x128xf32>
    %c0_7 = arith.constant 0 : index
    %c0_8 = arith.constant 0 : index
    %10 = vector.load %arg4[%c0_7, %c0_8] : memref<8x128xf32, #tpu.memory_space<vmem>>, vector<8x128xf32>
    tpu.vector_store %arg4[%c0_7, %c0_8], %9 {strides = array<i32>} : memref<8x128xf32, #tpu.memory_space<vmem>>, vector<8x128xf32>,
    %11 = tpu.iota {dimensions = array<i32: 0>} : vector<8x128xi32>
    %c2_i32 = arith.constant 2 : i32
    %12 = vector.broadcast %c2_i32 : i32 to vector<8x128xi32>
    %13 = arith.cmpi slt, %11, %12 : vector<8x128xi32>
    %cst_9 = arith.constant 0xFF800000 : f32
    %14 = vector.broadcast %cst_9 : f32 to vector<8x128xf32>
    %15 = arith.select %13, %9, %14 : vector<8x128xi1>, vector<8x128xf32>
    %cst_10 = arith.constant dense<0xFF800000> : vector<128xf32>
    %16 = vector.multi_reduction <maximumf>, %15, %cst_10 [0] : vector<8x128xf32> to vector<128xf32>
    %17 = vector.shape_cast %16 : vector<128xf32> to vector<1x128xf32>
    %18 = vector.broadcast %17 : vector<1x128xf32> to vector<8x128xf32>
    %19 = arith.subf %15, %18 : vector<8x128xf32>
    %20 = math.exp %19 : vector<8x128xf32>
    %cst_11 = arith.constant dense<0.000000e+00> : vector<128xf32>
    %21 = vector.multi_reduction <add>, %20, %cst_11 [0] : vector<8x128xf32> to vector<128xf32>
    %22 = vector.shape_cast %21 : vector<128xf32> to vector<1x128xf32>
    %23 = math.log %22 : vector<1x128xf32>
    %24 = vector.broadcast %17 : vector<1x128xf32> to vector<8x128xf32>
    %25 = arith.subf %9, %24 : vector<8x128xf32>
    %26 = vector.broadcast %23 : vector<1x128xf32> to vector<8x128xf32>
    %27 = arith.subf %25, %26 : vector<8x128xf32>
    %28 = tpu.iota {dimensions = array<i32: 1>} : vector<8x128xi32>
    %c32_i32 = arith.constant 32 : i32
    %29 = vector.broadcast %c32_i32 : i32 to vector<8x128xi32>
    %30 = arith.cmpi slt, %28, %29 : vector<8x128xi32>
    %31 = arith.select %30, %9, %27 : vector<8x128xi1>, vector<8x128xf32>
    %32 = arith.index_cast %c0_i32_2 : i32 to index
    %c0_12 = arith.constant 0 : index
    %c0_13 = arith.constant 0 : index
    %33 = vector.load %arg3[%32, %c0_12, %c0_13] : memref<8x8x128xf32, #tpu.memory_space<vmem>>, vector<1x8x128xf32>
    %34 = vector.shape_cast %33 : vector<1x8x128xf32> to vector<8x128xf32>
    %35 = vector.shape_cast %31 : vector<8x128xf32> to vector<1x8x128xf32>
    tpu.vector_store %arg3[%32, %c0_12, %c0_13], %35 {strides = array<i32>} : memref<8x8x128xf32, #tpu.memory_space<vmem>>, vector<1x8x128xf32>,
    %c1_i32 = arith.constant 1 : i32
    %c0_14 = arith.constant 0 : index
    %c0_15 = arith.constant 0 : index
    %36 = vector.load %arg4[%c0_14, %c0_15] : memref<8x128xf32, #tpu.memory_space<vmem>>, vector<8x128xf32>
    %37 = arith.index_cast %c1_i32 : i32 to index
    %c0_16 = arith.constant 0 : index
    %c0_17 = arith.constant 0 : index
    %38 = vector.load %arg1[%37, %c0_16, %c0_17] : memref<8x8x128xf32, #tpu.memory_space<vmem>>, vector<1x8x128xf32>
    %39 = vector.shape_cast %38 : vector<1x8x128xf32> to vector<8x128xf32>
    %cst_18 = arith.constant dense<0.000000e+00> : vector<8x128xf32>
    %40 = tpu.matmul %36, %3, %cst_18 {dimension_numbers = #tpu.dot_dimension_numbers<[1], [0], [0], [1], [0, 0, 1, 1], [], []>} : vector<8x128xf32>, vector<128x128xf32>, vector<8x128xf32> -> vector<8x128xf32>
    %41 = arith.addf %39, %40 : vector<8x128xf32>
    %c0_19 = arith.constant 0 : index
    %c0_20 = arith.constant 0 : index
    %42 = vector.load %arg4[%c0_19, %c0_20] : memref<8x128xf32, #tpu.memory_space<vmem>>, vector<8x128xf32>
    tpu.vector_store %arg4[%c0_19, %c0_20], %41 {strides = array<i32>} : memref<8x128xf32, #tpu.memory_space<vmem>>, vector<8x128xf32>,
    %43 = tpu.iota {dimensions = array<i32: 0>} : vector<8x128xi32>
    %c2_i32_21 = arith.constant 2 : i32
    %44 = vector.broadcast %c2_i32_21 : i32 to vector<8x128xi32>
    %45 = arith.cmpi slt, %43, %44 : vector<8x128xi32>
    %cst_22 = arith.constant 0xFF800000 : f32
    %46 = vector.broadcast %cst_22 : f32 to vector<8x128xf32>
    %47 = arith.select %45, %41, %46 : vector<8x128xi1>, vector<8x128xf32>
    %cst_23 = arith.constant dense<0xFF800000> : vector<128xf32>
    %48 = vector.multi_reduction <maximumf>, %47, %cst_23 [0] : vector<8x128xf32> to vector<128xf32>
    %49 = vector.shape_cast %48 : vector<128xf32> to vector<1x128xf32>
    %50 = vector.broadcast %49 : vector<1x128xf32> to vector<8x128xf32>
    %51 = arith.subf %47, %50 : vector<8x128xf32>
    %52 = math.exp %51 : vector<8x128xf32>
    %cst_24 = arith.constant dense<0.000000e+00> : vector<128xf32>
    %53 = vector.multi_reduction <add>, %52, %cst_24 [0] : vector<8x128xf32> to vector<128xf32>
    %54 = vector.shape_cast %53 : vector<128xf32> to vector<1x128xf32>
    %55 = math.log %54 : vector<1x128xf32>
    %56 = vector.broadcast %49 : vector<1x128xf32> to vector<8x128xf32>
    %57 = arith.subf %41, %56 : vector<8x128xf32>
    %58 = vector.broadcast %55 : vector<1x128xf32> to vector<8x128xf32>
    %59 = arith.subf %57, %58 : vector<8x128xf32>
    %60 = tpu.iota {dimensions = array<i32: 1>} : vector<8x128xi32>
    %c32_i32_25 = arith.constant 32 : i32
    %61 = vector.broadcast %c32_i32_25 : i32 to vector<8x128xi32>
    %62 = arith.cmpi slt, %60, %61 : vector<8x128xi32>
    %63 = arith.select %62, %41, %59 : vector<8x128xi1>, vector<8x128xf32>
    %64 = arith.index_cast %c1_i32 : i32 to index
    %c0_26 = arith.constant 0 : index
    %c0_27 = arith.constant 0 : index
    %65 = vector.load %arg3[%64, %c0_26, %c0_27] : memref<8x8x128xf32, #tpu.memory_space<vmem>>, vector<1x8x128xf32>
    %66 = vector.shape_cast %65 : vector<1x8x128xf32> to vector<8x128xf32>
    %67 = vector.shape_cast %63 : vector<8x128xf32> to vector<1x8x128xf32>
    tpu.vector_store %arg3[%64, %c0_26, %c0_27], %67 {strides = array<i32>} : memref<8x8x128xf32, #tpu.memory_space<vmem>>, vector<1x8x128xf32>,
    %c2_i32_28 = arith.constant 2 : i32
    %c0_29 = arith.constant 0 : index
    %c0_30 = arith.constant 0 : index
    %68 = vector.load %arg4[%c0_29, %c0_30] : memref<8x128xf32, #tpu.memory_space<vmem>>, vector<8x128xf32>
    %69 = arith.index_cast %c2_i32_28 : i32 to index
    %c0_31 = arith.constant 0 : index
    %c0_32 = arith.constant 0 : index
    %70 = vector.load %arg1[%69, %c0_31, %c0_32] : memref<8x8x128xf32, #tpu.memory_space<vmem>>, vector<1x8x128xf32>
    %71 = vector.shape_cast %70 : vector<1x8x128xf32> to vector<8x128xf32>
    %cst_33 = arith.constant dense<0.000000e+00> : vector<8x128xf32>
    %72 = tpu.matmul %68, %3, %cst_33 {dimension_numbers = #tpu.dot_dimension_numbers<[1], [0], [0], [1], [0, 0, 1, 1], [], []>} : vector<8x128xf32>, vector<128x128xf32>, vector<8x128xf32> -> vector<8x128xf32>
    %73 = arith.addf %71, %72 : vector<8x128xf32>
    %c0_34 = arith.constant 0 : index
    %c0_35 = arith.constant 0 : index
    %74 = vector.load %arg4[%c0_34, %c0_35] : memref<8x128xf32, #tpu.memory_space<vmem>>, vector<8x128xf32>
    tpu.vector_store %arg4[%c0_34, %c0_35], %73 {strides = array<i32>} : memref<8x128xf32, #tpu.memory_space<vmem>>, vector<8x128xf32>,
    %75 = tpu.iota {dimensions = array<i32: 0>} : vector<8x128xi32>
    %c2_i32_36 = arith.constant 2 : i32
    %76 = vector.broadcast %c2_i32_36 : i32 to vector<8x128xi32>
    %77 = arith.cmpi slt, %75, %76 : vector<8x128xi32>
    %cst_37 = arith.constant 0xFF800000 : f32
    %78 = vector.broadcast %cst_37 : f32 to vector<8x128xf32>
    %79 = arith.select %77, %73, %78 : vector<8x128xi1>, vector<8x128xf32>
    %cst_38 = arith.constant dense<0xFF800000> : vector<128xf32>
    %80 = vector.multi_reduction <maximumf>, %79, %cst_38 [0] : vector<8x128xf32> to vector<128xf32>
    %81 = vector.shape_cast %80 : vector<128xf32> to vector<1x128xf32>
    %82 = vector.broadcast %81 : vector<1x128xf32> to vector<8x128xf32>
    %83 = arith.subf %79, %82 : vector<8x128xf32>
    %84 = math.exp %83 : vector<8x128xf32>
    %cst_39 = arith.constant dense<0.000000e+00> : vector<128xf32>
    %85 = vector.multi_reduction <add>, %84, %cst_39 [0] : vector<8x128xf32> to vector<128xf32>
    %86 = vector.shape_cast %85 : vector<128xf32> to vector<1x128xf32>
    %87 = math.log %86 : vector<1x128xf32>
    %88 = vector.broadcast %81 : vector<1x128xf32> to vector<8x128xf32>
    %89 = arith.subf %73, %88 : vector<8x128xf32>
    %90 = vector.broadcast %87 : vector<1x128xf32> to vector<8x128xf32>
    %91 = arith.subf %89, %90 : vector<8x128xf32>
    %92 = tpu.iota {dimensions = array<i32: 1>} : vector<8x128xi32>
    %c32_i32_40 = arith.constant 32 : i32
    %93 = vector.broadcast %c32_i32_40 : i32 to vector<8x128xi32>
    %94 = arith.cmpi slt, %92, %93 : vector<8x128xi32>
    %95 = arith.select %94, %73, %91 : vector<8x128xi1>, vector<8x128xf32>
    %96 = arith.index_cast %c2_i32_28 : i32 to index
    %c0_41 = arith.constant 0 : index
    %c0_42 = arith.constant 0 : index
    %97 = vector.load %arg3[%96, %c0_41, %c0_42] : memref<8x8x128xf32, #tpu.memory_space<vmem>>, vector<1x8x128xf32>
    %98 = vector.shape_cast %97 : vector<1x8x128xf32> to vector<8x128xf32>
    %99 = vector.shape_cast %95 : vector<8x128xf32> to vector<1x8x128xf32>
    tpu.vector_store %arg3[%96, %c0_41, %c0_42], %99 {strides = array<i32>} : memref<8x8x128xf32, #tpu.memory_space<vmem>>, vector<1x8x128xf32>,
    %c3_i32 = arith.constant 3 : i32
    %c0_43 = arith.constant 0 : index
    %c0_44 = arith.constant 0 : index
    %100 = vector.load %arg4[%c0_43, %c0_44] : memref<8x128xf32, #tpu.memory_space<vmem>>, vector<8x128xf32>
    %101 = arith.index_cast %c3_i32 : i32 to index
    %c0_45 = arith.constant 0 : index
    %c0_46 = arith.constant 0 : index
    %102 = vector.load %arg1[%101, %c0_45, %c0_46] : memref<8x8x128xf32, #tpu.memory_space<vmem>>, vector<1x8x128xf32>
    %103 = vector.shape_cast %102 : vector<1x8x128xf32> to vector<8x128xf32>
    %cst_47 = arith.constant dense<0.000000e+00> : vector<8x128xf32>
    %104 = tpu.matmul %100, %3, %cst_47 {dimension_numbers = #tpu.dot_dimension_numbers<[1], [0], [0], [1], [0, 0, 1, 1], [], []>} : vector<8x128xf32>, vector<128x128xf32>, vector<8x128xf32> -> vector<8x128xf32>
    %105 = arith.addf %103, %104 : vector<8x128xf32>
    %c0_48 = arith.constant 0 : index
    %c0_49 = arith.constant 0 : index
    %106 = vector.load %arg4[%c0_48, %c0_49] : memref<8x128xf32, #tpu.memory_space<vmem>>, vector<8x128xf32>
    tpu.vector_store %arg4[%c0_48, %c0_49], %105 {strides = array<i32>} : memref<8x128xf32, #tpu.memory_space<vmem>>, vector<8x128xf32>,
    %107 = tpu.iota {dimensions = array<i32: 0>} : vector<8x128xi32>
    %c2_i32_50 = arith.constant 2 : i32
    %108 = vector.broadcast %c2_i32_50 : i32 to vector<8x128xi32>
    %109 = arith.cmpi slt, %107, %108 : vector<8x128xi32>
    %cst_51 = arith.constant 0xFF800000 : f32
    %110 = vector.broadcast %cst_51 : f32 to vector<8x128xf32>
    %111 = arith.select %109, %105, %110 : vector<8x128xi1>, vector<8x128xf32>
    %cst_52 = arith.constant dense<0xFF800000> : vector<128xf32>
    %112 = vector.multi_reduction <maximumf>, %111, %cst_52 [0] : vector<8x128xf32> to vector<128xf32>
    %113 = vector.shape_cast %112 : vector<128xf32> to vector<1x128xf32>
    %114 = vector.broadcast %113 : vector<1x128xf32> to vector<8x128xf32>
    %115 = arith.subf %111, %114 : vector<8x128xf32>
    %116 = math.exp %115 : vector<8x128xf32>
    %cst_53 = arith.constant dense<0.000000e+00> : vector<128xf32>
    %117 = vector.multi_reduction <add>, %116, %cst_53 [0] : vector<8x128xf32> to vector<128xf32>
    %118 = vector.shape_cast %117 : vector<128xf32> to vector<1x128xf32>
    %119 = math.log %118 : vector<1x128xf32>
    %120 = vector.broadcast %113 : vector<1x128xf32> to vector<8x128xf32>
    %121 = arith.subf %105, %120 : vector<8x128xf32>
    %122 = vector.broadcast %119 : vector<1x128xf32> to vector<8x128xf32>
    %123 = arith.subf %121, %122 : vector<8x128xf32>
    %124 = tpu.iota {dimensions = array<i32: 1>} : vector<8x128xi32>
    %c32_i32_54 = arith.constant 32 : i32
    %125 = vector.broadcast %c32_i32_54 : i32 to vector<8x128xi32>
    %126 = arith.cmpi slt, %124, %125 : vector<8x128xi32>
    %127 = arith.select %126, %105, %123 : vector<8x128xi1>, vector<8x128xf32>
    %128 = arith.index_cast %c3_i32 : i32 to index
    %c0_55 = arith.constant 0 : index
    %c0_56 = arith.constant 0 : index
    %129 = vector.load %arg3[%128, %c0_55, %c0_56] : memref<8x8x128xf32, #tpu.memory_space<vmem>>, vector<1x8x128xf32>
    %130 = vector.shape_cast %129 : vector<1x8x128xf32> to vector<8x128xf32>
    %131 = vector.shape_cast %127 : vector<8x128xf32> to vector<1x8x128xf32>
    tpu.vector_store %arg3[%128, %c0_55, %c0_56], %131 {strides = array<i32>} : memref<8x8x128xf32, #tpu.memory_space<vmem>>, vector<1x8x128xf32>,
    %c4_i32 = arith.constant 4 : i32
    %c0_57 = arith.constant 0 : index
    %c0_58 = arith.constant 0 : index
    %132 = vector.load %arg4[%c0_57, %c0_58] : memref<8x128xf32, #tpu.memory_space<vmem>>, vector<8x128xf32>
    %133 = arith.index_cast %c4_i32 : i32 to index
    %c0_59 = arith.constant 0 : index
    %c0_60 = arith.constant 0 : index
    %134 = vector.load %arg1[%133, %c0_59, %c0_60] : memref<8x8x128xf32, #tpu.memory_space<vmem>>, vector<1x8x128xf32>
    %135 = vector.shape_cast %134 : vector<1x8x128xf32> to vector<8x128xf32>
    %cst_61 = arith.constant dense<0.000000e+00> : vector<8x128xf32>
    %136 = tpu.matmul %132, %3, %cst_61 {dimension_numbers = #tpu.dot_dimension_numbers<[1], [0], [0], [1], [0, 0, 1, 1], [], []>} : vector<8x128xf32>, vector<128x128xf32>, vector<8x128xf32> -> vector<8x128xf32>
    %137 = arith.addf %135, %136 : vector<8x128xf32>
    %c0_62 = arith.constant 0 : index
    %c0_63 = arith.constant 0 : index
    %138 = vector.load %arg4[%c0_62, %c0_63] : memref<8x128xf32, #tpu.memory_space<vmem>>, vector<8x128xf32>
    tpu.vector_store %arg4[%c0_62, %c0_63], %137 {strides = array<i32>} : memref<8x128xf32, #tpu.memory_space<vmem>>, vector<8x128xf32>,
    %139 = tpu.iota {dimensions = array<i32: 0>} : vector<8x128xi32>
    %c2_i32_64 = arith.constant 2 : i32
    %140 = vector.broadcast %c2_i32_64 : i32 to vector<8x128xi32>
    %141 = arith.cmpi slt, %139, %140 : vector<8x128xi32>
    %cst_65 = arith.constant 0xFF800000 : f32
    %142 = vector.broadcast %cst_65 : f32 to vector<8x128xf32>
    %143 = arith.select %141, %137, %142 : vector<8x128xi1>, vector<8x128xf32>
    %cst_66 = arith.constant dense<0xFF800000> : vector<128xf32>
    %144 = vector.multi_reduction <maximumf>, %143, %cst_66 [0] : vector<8x128xf32> to vector<128xf32>
    %145 = vector.shape_cast %144 : vector<128xf32> to vector<1x128xf32>
    %146 = vector.broadcast %145 : vector<1x128xf32> to vector<8x128xf32>
    %147 = arith.subf %143, %146 : vector<8x128xf32>
    %148 = math.exp %147 : vector<8x128xf32>
    %cst_67 = arith.constant dense<0.000000e+00> : vector<128xf32>
    %149 = vector.multi_reduction <add>, %148, %cst_67 [0] : vector<8x128xf32> to vector<128xf32>
    %150 = vector.shape_cast %149 : vector<128xf32> to vector<1x128xf32>
    %151 = math.log %150 : vector<1x128xf32>
    %152 = vector.broadcast %145 : vector<1x128xf32> to vector<8x128xf32>
    %153 = arith.subf %137, %152 : vector<8x128xf32>
    %154 = vector.broadcast %151 : vector<1x128xf32> to vector<8x128xf32>
    %155 = arith.subf %153, %154 : vector<8x128xf32>
    %156 = tpu.iota {dimensions = array<i32: 1>} : vector<8x128xi32>
    %c32_i32_68 = arith.constant 32 : i32
    %157 = vector.broadcast %c32_i32_68 : i32 to vector<8x128xi32>
    %158 = arith.cmpi slt, %156, %157 : vector<8x128xi32>
    %159 = arith.select %158, %137, %155 : vector<8x128xi1>, vector<8x128xf32>
    %160 = arith.index_cast %c4_i32 : i32 to index
    %c0_69 = arith.constant 0 : index
    %c0_70 = arith.constant 0 : index
    %161 = vector.load %arg3[%160, %c0_69, %c0_70] : memref<8x8x128xf32, #tpu.memory_space<vmem>>, vector<1x8x128xf32>
    %162 = vector.shape_cast %161 : vector<1x8x128xf32> to vector<8x128xf32>
    %163 = vector.shape_cast %159 : vector<8x128xf32> to vector<1x8x128xf32>
    tpu.vector_store %arg3[%160, %c0_69, %c0_70], %163 {strides = array<i32>} : memref<8x8x128xf32, #tpu.memory_space<vmem>>, vector<1x8x128xf32>,
    %c5_i32 = arith.constant 5 : i32
    %c0_71 = arith.constant 0 : index
    %c0_72 = arith.constant 0 : index
    %164 = vector.load %arg4[%c0_71, %c0_72] : memref<8x128xf32, #tpu.memory_space<vmem>>, vector<8x128xf32>
    %165 = arith.index_cast %c5_i32 : i32 to index
    %c0_73 = arith.constant 0 : index
    %c0_74 = arith.constant 0 : index
    %166 = vector.load %arg1[%165, %c0_73, %c0_74] : memref<8x8x128xf32, #tpu.memory_space<vmem>>, vector<1x8x128xf32>
    %167 = vector.shape_cast %166 : vector<1x8x128xf32> to vector<8x128xf32>
    %cst_75 = arith.constant dense<0.000000e+00> : vector<8x128xf32>
    %168 = tpu.matmul %164, %3, %cst_75 {dimension_numbers = #tpu.dot_dimension_numbers<[1], [0], [0], [1], [0, 0, 1, 1], [], []>} : vector<8x128xf32>, vector<128x128xf32>, vector<8x128xf32> -> vector<8x128xf32>
    %169 = arith.addf %167, %168 : vector<8x128xf32>
    %c0_76 = arith.constant 0 : index
    %c0_77 = arith.constant 0 : index
    %170 = vector.load %arg4[%c0_76, %c0_77] : memref<8x128xf32, #tpu.memory_space<vmem>>, vector<8x128xf32>
    tpu.vector_store %arg4[%c0_76, %c0_77], %169 {strides = array<i32>} : memref<8x128xf32, #tpu.memory_space<vmem>>, vector<8x128xf32>,
    %171 = tpu.iota {dimensions = array<i32: 0>} : vector<8x128xi32>
    %c2_i32_78 = arith.constant 2 : i32
    %172 = vector.broadcast %c2_i32_78 : i32 to vector<8x128xi32>
    %173 = arith.cmpi slt, %171, %172 : vector<8x128xi32>
    %cst_79 = arith.constant 0xFF800000 : f32
    %174 = vector.broadcast %cst_79 : f32 to vector<8x128xf32>
    %175 = arith.select %173, %169, %174 : vector<8x128xi1>, vector<8x128xf32>
    %cst_80 = arith.constant dense<0xFF800000> : vector<128xf32>
    %176 = vector.multi_reduction <maximumf>, %175, %cst_80 [0] : vector<8x128xf32> to vector<128xf32>
    %177 = vector.shape_cast %176 : vector<128xf32> to vector<1x128xf32>
    %178 = vector.broadcast %177 : vector<1x128xf32> to vector<8x128xf32>
    %179 = arith.subf %175, %178 : vector<8x128xf32>
    %180 = math.exp %179 : vector<8x128xf32>
    %cst_81 = arith.constant dense<0.000000e+00> : vector<128xf32>
    %181 = vector.multi_reduction <add>, %180, %cst_81 [0] : vector<8x128xf32> to vector<128xf32>
    %182 = vector.shape_cast %181 : vector<128xf32> to vector<1x128xf32>
    %183 = math.log %182 : vector<1x128xf32>
    %184 = vector.broadcast %177 : vector<1x128xf32> to vector<8x128xf32>
    %185 = arith.subf %169, %184 : vector<8x128xf32>
    %186 = vector.broadcast %183 : vector<1x128xf32> to vector<8x128xf32>
    %187 = arith.subf %185, %186 : vector<8x128xf32>
    %188 = tpu.iota {dimensions = array<i32: 1>} : vector<8x128xi32>
    %c32_i32_82 = arith.constant 32 : i32
    %189 = vector.broadcast %c32_i32_82 : i32 to vector<8x128xi32>
    %190 = arith.cmpi slt, %188, %189 : vector<8x128xi32>
    %191 = arith.select %190, %169, %187 : vector<8x128xi1>, vector<8x128xf32>
    %192 = arith.index_cast %c5_i32 : i32 to index
    %c0_83 = arith.constant 0 : index
    %c0_84 = arith.constant 0 : index
    %193 = vector.load %arg3[%192, %c0_83, %c0_84] : memref<8x8x128xf32, #tpu.memory_space<vmem>>, vector<1x8x128xf32>
    %194 = vector.shape_cast %193 : vector<1x8x128xf32> to vector<8x128xf32>
    %195 = vector.shape_cast %191 : vector<8x128xf32> to vector<1x8x128xf32>
    tpu.vector_store %arg3[%192, %c0_83, %c0_84], %195 {strides = array<i32>} : memref<8x8x128xf32, #tpu.memory_space<vmem>>, vector<1x8x128xf32>,
    %c6_i32 = arith.constant 6 : i32
    %c0_85 = arith.constant 0 : index
    %c0_86 = arith.constant 0 : index
    %196 = vector.load %arg4[%c0_85, %c0_86] : memref<8x128xf32, #tpu.memory_space<vmem>>, vector<8x128xf32>
    %197 = arith.index_cast %c6_i32 : i32 to index
    %c0_87 = arith.constant 0 : index
    %c0_88 = arith.constant 0 : index
    %198 = vector.load %arg1[%197, %c0_87, %c0_88] : memref<8x8x128xf32, #tpu.memory_space<vmem>>, vector<1x8x128xf32>
    %199 = vector.shape_cast %198 : vector<1x8x128xf32> to vector<8x128xf32>
    %cst_89 = arith.constant dense<0.000000e+00> : vector<8x128xf32>
    %200 = tpu.matmul %196, %3, %cst_89 {dimension_numbers = #tpu.dot_dimension_numbers<[1], [0], [0], [1], [0, 0, 1, 1], [], []>} : vector<8x128xf32>, vector<128x128xf32>, vector<8x128xf32> -> vector<8x128xf32>
    %201 = arith.addf %199, %200 : vector<8x128xf32>
    %c0_90 = arith.constant 0 : index
    %c0_91 = arith.constant 0 : index
    %202 = vector.load %arg4[%c0_90, %c0_91] : memref<8x128xf32, #tpu.memory_space<vmem>>, vector<8x128xf32>
    tpu.vector_store %arg4[%c0_90, %c0_91], %201 {strides = array<i32>} : memref<8x128xf32, #tpu.memory_space<vmem>>, vector<8x128xf32>,
    %203 = tpu.iota {dimensions = array<i32: 0>} : vector<8x128xi32>
    %c2_i32_92 = arith.constant 2 : i32
    %204 = vector.broadcast %c2_i32_92 : i32 to vector<8x128xi32>
    %205 = arith.cmpi slt, %203, %204 : vector<8x128xi32>
    %cst_93 = arith.constant 0xFF800000 : f32
    %206 = vector.broadcast %cst_93 : f32 to vector<8x128xf32>
    %207 = arith.select %205, %201, %206 : vector<8x128xi1>, vector<8x128xf32>
    %cst_94 = arith.constant dense<0xFF800000> : vector<128xf32>
    %208 = vector.multi_reduction <maximumf>, %207, %cst_94 [0] : vector<8x128xf32> to vector<128xf32>
    %209 = vector.shape_cast %208 : vector<128xf32> to vector<1x128xf32>
    %210 = vector.broadcast %209 : vector<1x128xf32> to vector<8x128xf32>
    %211 = arith.subf %207, %210 : vector<8x128xf32>
    %212 = math.exp %211 : vector<8x128xf32>
    %cst_95 = arith.constant dense<0.000000e+00> : vector<128xf32>
    %213 = vector.multi_reduction <add>, %212, %cst_95 [0] : vector<8x128xf32> to vector<128xf32>
    %214 = vector.shape_cast %213 : vector<128xf32> to vector<1x128xf32>
    %215 = math.log %214 : vector<1x128xf32>
    %216 = vector.broadcast %209 : vector<1x128xf32> to vector<8x128xf32>
    %217 = arith.subf %201, %216 : vector<8x128xf32>
    %218 = vector.broadcast %215 : vector<1x128xf32> to vector<8x128xf32>
    %219 = arith.subf %217, %218 : vector<8x128xf32>
    %220 = tpu.iota {dimensions = array<i32: 1>} : vector<8x128xi32>
    %c32_i32_96 = arith.constant 32 : i32
    %221 = vector.broadcast %c32_i32_96 : i32 to vector<8x128xi32>
    %222 = arith.cmpi slt, %220, %221 : vector<8x128xi32>
    %223 = arith.select %222, %201, %219 : vector<8x128xi1>, vector<8x128xf32>
    %224 = arith.index_cast %c6_i32 : i32 to index
    %c0_97 = arith.constant 0 : index
    %c0_98 = arith.constant 0 : index
    %225 = vector.load %arg3[%224, %c0_97, %c0_98] : memref<8x8x128xf32, #tpu.memory_space<vmem>>, vector<1x8x128xf32>
    %226 = vector.shape_cast %225 : vector<1x8x128xf32> to vector<8x128xf32>
    %227 = vector.shape_cast %223 : vector<8x128xf32> to vector<1x8x128xf32>
    tpu.vector_store %arg3[%224, %c0_97, %c0_98], %227 {strides = array<i32>} : memref<8x8x128xf32, #tpu.memory_space<vmem>>, vector<1x8x128xf32>,
    %c7_i32 = arith.constant 7 : i32
    %c0_99 = arith.constant 0 : index
    %c0_100 = arith.constant 0 : index
    %228 = vector.load %arg4[%c0_99, %c0_100] : memref<8x128xf32, #tpu.memory_space<vmem>>, vector<8x128xf32>
    %229 = arith.index_cast %c7_i32 : i32 to index
    %c0_101 = arith.constant 0 : index
    %c0_102 = arith.constant 0 : index
    %230 = vector.load %arg1[%229, %c0_101, %c0_102] : memref<8x8x128xf32, #tpu.memory_space<vmem>>, vector<1x8x128xf32>
    %231 = vector.shape_cast %230 : vector<1x8x128xf32> to vector<8x128xf32>
    %cst_103 = arith.constant dense<0.000000e+00> : vector<8x128xf32>
    %232 = tpu.matmul %228, %3, %cst_103 {dimension_numbers = #tpu.dot_dimension_numbers<[1], [0], [0], [1], [0, 0, 1, 1], [], []>} : vector<8x128xf32>, vector<128x128xf32>, vector<8x128xf32> -> vector<8x128xf32>
    %233 = arith.addf %231, %232 : vector<8x128xf32>
    %c0_104 = arith.constant 0 : index
    %c0_105 = arith.constant 0 : index
    %234 = vector.load %arg4[%c0_104, %c0_105] : memref<8x128xf32, #tpu.memory_space<vmem>>, vector<8x128xf32>
    tpu.vector_store %arg4[%c0_104, %c0_105], %233 {strides = array<i32>} : memref<8x128xf32, #tpu.memory_space<vmem>>, vector<8x128xf32>,
    %235 = tpu.iota {dimensions = array<i32: 0>} : vector<8x128xi32>
    %c2_i32_106 = arith.constant 2 : i32
    %236 = vector.broadcast %c2_i32_106 : i32 to vector<8x128xi32>
    %237 = arith.cmpi slt, %235, %236 : vector<8x128xi32>
    %cst_107 = arith.constant 0xFF800000 : f32
    %238 = vector.broadcast %cst_107 : f32 to vector<8x128xf32>
    %239 = arith.select %237, %233, %238 : vector<8x128xi1>, vector<8x128xf32>
    %cst_108 = arith.constant dense<0xFF800000> : vector<128xf32>
    %240 = vector.multi_reduction <maximumf>, %239, %cst_108 [0] : vector<8x128xf32> to vector<128xf32>
    %241 = vector.shape_cast %240 : vector<128xf32> to vector<1x128xf32>
    %242 = vector.broadcast %241 : vector<1x128xf32> to vector<8x128xf32>
    %243 = arith.subf %239, %242 : vector<8x128xf32>
    %244 = math.exp %243 : vector<8x128xf32>
    %cst_109 = arith.constant dense<0.000000e+00> : vector<128xf32>
    %245 = vector.multi_reduction <add>, %244, %cst_109 [0] : vector<8x128xf32> to vector<128xf32>
    %246 = vector.shape_cast %245 : vector<128xf32> to vector<1x128xf32>
    %247 = math.log %246 : vector<1x128xf32>
    %248 = vector.broadcast %241 : vector<1x128xf32> to vector<8x128xf32>
    %249 = arith.subf %233, %248 : vector<8x128xf32>
    %250 = vector.broadcast %247 : vector<1x128xf32> to vector<8x128xf32>
    %251 = arith.subf %249, %250 : vector<8x128xf32>
    %252 = tpu.iota {dimensions = array<i32: 1>} : vector<8x128xi32>
    %c32_i32_110 = arith.constant 32 : i32
    %253 = vector.broadcast %c32_i32_110 : i32 to vector<8x128xi32>
    %254 = arith.cmpi slt, %252, %253 : vector<8x128xi32>
    %255 = arith.select %254, %233, %251 : vector<8x128xi1>, vector<8x128xf32>
    %256 = arith.index_cast %c7_i32 : i32 to index
    %c0_111 = arith.constant 0 : index
    %c0_112 = arith.constant 0 : index
    %257 = vector.load %arg3[%256, %c0_111, %c0_112] : memref<8x8x128xf32, #tpu.memory_space<vmem>>, vector<1x8x128xf32>
    %258 = vector.shape_cast %257 : vector<1x8x128xf32> to vector<8x128xf32>
    %259 = vector.shape_cast %255 : vector<8x128xf32> to vector<1x8x128xf32>
    tpu.vector_store %arg3[%256, %c0_111, %c0_112], %259 {strides = array<i32>} : memref<8x8x128xf32, #tpu.memory_space<vmem>>, vector<1x8x128xf32>,
    %c8_i32 = arith.constant 8 : i32
    return
  }
  func.func @transform_0(%arg0: i32) -> (i32, i32, i32) {
    %c0_i32 = arith.constant 0 : i32
    %c0_i32_0 = arith.constant 0 : i32
    %c0_i32_1 = arith.constant 0 : i32
    return %arg0, %c0_i32, %c0_i32_0 : i32, i32, i32
  }
  func.func @transform_1(%arg0: i32) -> (i32, i32) {
    %c0_i32 = arith.constant 0 : i32
    %c0_i32_0 = arith.constant 0 : i32
    %c0_i32_1 = arith.constant 0 : i32
    return %c0_i32, %c0_i32_0 : i32, i32
  }
  func.func @transform_2(%arg0: i32) -> (i32, i32, i32) {
    %c0_i32 = arith.constant 0 : i32
    %c0_i32_0 = arith.constant 0 : i32
    %c0_i32_1 = arith.constant 0 : i32
    return %arg0, %c0_i32, %c0_i32_0 : i32, i32, i32
  }
}

</mosaic_0001>

<llo_original>
// kernel: tpu_custom_call.1
$region0: #{tpu_custom_call.1}
  #allocation0 [shape = 'u32[]', space=smem, size = 0x4, offset = 0x4, fixed_abs, tag = 'smem constant byte address 0x4 - core index']
  #allocation1 [shape = 'u32[72,128]{1,0:T(1,128)}', space=vmem, size = 0x9000, scoped, tag = 'internal scratch']
  #allocation2 [shape = 'f32[8,128]{1,0:T(8,128)}', space=vmem, size = 0x1000, scoped, tag = 'scratch operand']
  %s0 = inlined_call_operand.hbm [shape: f32[8,8,128], index: 0, kind: input, shape index: {}]
  %s1 = inlined_call_operand.hbm [shape: f32[128,128], index: 1, kind: input, shape index: {}]
  %s2 = inlined_call_operand.hbm [shape: f32[8,8,128], index: 2, kind: output, shape index: {}]
  %s3 = sld [smem:[#allocation0]]
  $region30: #{tpu_custom_call.1} parent=0
    _
  %s5 = ssub.s32 1, %s3
  %s6 = scalar_select 0, %s5, %s3
  $region1: #{tpu_custom_call.1} parent=0
    #allocation3 [shape = 'u8[32768]{0}', space=vmem, size = 0x8000, scoped, tag = 'input window, operand 0, single buffered']
    #allocation4 [shape = 's32[1]{0}', space=sflag, size = 0x4, scoped, tag = 'scoped memory for tpu_custom_call.1']
    #allocation5 [shape = 's32[1]{0}', space=sflag, size = 0x4, scoped, tag = 'scoped memory for tpu_custom_call.1']
    #allocation6 [shape = 'u8[65536]{0}', space=vmem, size = 0x10000, scoped, tag = 'input window, operand 1, single buffered']
    #allocation7 [shape = 's32[1]{0}', space=sflag, size = 0x4, scoped, tag = 'scoped memory for tpu_custom_call.1']
    #allocation8 [shape = 'u8[32768]{0}', space=vmem, size = 0x8000, scoped, tag = 'output window, operand 0, single buffered']
    %7 = vsyncpa [#allocation4], 0
    %8 = vsyncpa [#allocation7], 0
    %9 = vsyncpa [#allocation5], 0
    // Predicated region
    $region2: #{tpu_custom_call.1} parent=1 // pred_check
      _
    $region3: #{tpu_custom_call.1} parent=1 // pred_check_branch
      %11 = sbr.rel (0) target = $region5
    $region4: #{tpu_custom_call.1} parent=1 // pred_region
      %13 = vsyncadd [#allocation4], 0
      %s14 = sshll.u32 %s0, 4
      %s15 = int_to_ptr.hbm [resolvable:$true] %s14
      %s16 = sshll.u32 [#allocation3], 4
      %s17 = int_to_ptr.vmem [resolvable:$true] %s16
      %22 = dma.hbm_to_vmem [thread:$0]  %s15, 1024, %s17, [#allocation4], 128, 128, 8
    $region5: #{tpu_custom_call.1} parent=1 // pred_fallthru
      _
    // Predicated region
    $region6: #{tpu_custom_call.1} parent=1 // pred_check
      _
    $region7: #{tpu_custom_call.1} parent=1 // pred_check_branch
      %24 = sbr.rel (0) target = $region9
    $region8: #{tpu_custom_call.1} parent=1 // pred_region
      %26 = vsyncadd [#allocation7], 0
      %s27 = sshll.u32 %s1, 4
      %s28 = int_to_ptr.hbm [resolvable:$true] %s27
      %s29 = sshll.u32 [#allocation6], 4
      %s30 = int_to_ptr.vmem [resolvable:$true] %s29
      %35 = dma.hbm_to_vmem [thread:$0]  %s28, 2048, %s30, [#allocation7], 128, 128, 8
    $region9: #{tpu_custom_call.1} parent=1 // pred_fallthru
      _
    // Predicated region
    $region10: #{tpu_custom_call.1} parent=1 // pred_check
      _
    $region11: #{tpu_custom_call.1} parent=1 // pred_check_branch
      %37 = sbr.rel (0) target = $region13
    $region12: #{tpu_custom_call.1} parent=1 // pred_region
      %39 = dma.done [#allocation4], 1024
    $region13: #{tpu_custom_call.1} parent=1 // pred_fallthru
      _
    // Predicated region
    $region14: #{tpu_custom_call.1} parent=1 // pred_check
      _
    $region15: #{tpu_custom_call.1} parent=1 // pred_check_branch
      %41 = sbr.rel (0) target = $region17
    $region16: #{tpu_custom_call.1} parent=1 // pred_region
      %43 = dma.done [#allocation7], 2048
    $region17: #{tpu_custom_call.1} parent=1 // pred_fallthru
      _
    %p44 = scmp.eq.s32.totalorder 0, 0
    // Predicated region
    $region18: #{tpu_custom_call.1} parent=1 // pred_check
      %p45 = pneg %p44
    $region19: #{tpu_custom_call.1} parent=1 // pred_check_branch
      %47 = sbr.rel (%p45) target = $region21
    $region20: #{tpu_custom_call.1} parent=1 // pred_region
      %48 = vst [vmem:[#allocation2] sm:$0xff] 0.0
    $region21: #{tpu_custom_call.1} parent=1 // pred_fallthru
      _
    %v49 = vld [vmem:[#allocation6] sm:$0xff]
    %v50 = vld [vmem:[#allocation6 + $0x8] sm:$0xff]
    %v51 = vld [vmem:[#allocation6 + $0x10] sm:$0xff]
    %v52 = vld [vmem:[#allocation6 + $0x18] sm:$0xff]
    %v53 = vld [vmem:[#allocation6 + $0x20] sm:$0xff]
    %v54 = vld [vmem:[#allocation6 + $0x28] sm:$0xff]
    %v55 = vld [vmem:[#allocation6 + $0x30] sm:$0xff]
    %v56 = vld [vmem:[#allocation6 + $0x38] sm:$0xff]
    %v57 = vld [vmem:[#allocation6 + $0x40] sm:$0xff]
    %v58 = vld [vmem:[#allocation6 + $0x48] sm:$0xff]
    %v59 = vld [vmem:[#allocation6 + $0x50] sm:$0xff]
    %v60 = vld [vmem:[#allocation6 + $0x58] sm:$0xff]
    %v61 = vld [vmem:[#allocation6 + $0x60] sm:$0xff]
    %v62 = vld [vmem:[#allocation6 + $0x68] sm:$0xff]
    %v63 = vld [vmem:[#allocation6 + $0x70] sm:$0xff]
    %v64 = vld [vmem:[#allocation6 + $0x78] sm:$0xff]
    %v65 = vld [vmem:[#allocation2] sm:$0xff]
    %v66 = vld [vmem:[#allocation3] sm:$0xff]
    %67 = vmatpush.msra.mxu0 %v64
    %68 = vmatpush.msra.mxu0 %v63
    %69 = vmatpush.msra.mxu0 %v62
    %70 = vmatpush.msra.mxu0 %v61
    %71 = vmatpush.msra.mxu0 %v60
    %72 = vmatpush.msra.mxu0 %v59
    %73 = vmatpush.msra.mxu0 %v58
    %74 = vmatpush.msra.mxu0 %v57
    %75 = vmatpush.msra.mxu0 %v56
    %76 = vmatpush.msra.mxu0 %v55
    %77 = vmatpush.msra.mxu0 %v54
    %78 = vmatpush.msra.mxu0 %v53
    %79 = vmatpush.msra.mxu0 %v52
    %80 = vmatpush.msra.mxu0 %v51
    %81 = vmatpush.msra.mxu0 %v50
    %82 = vmatpush.msra.mxu0 %v49
    %83 = vmatmul.f32.gmra.mxu0 %v65
    %v84 = vpop.f32.mrf.mxu0
    %v85 = vadd.f32 0.0, %v84
    %86 = vdwg.mxu0
    %v87 = vadd.f32 %v66, %v85
    %88 = vst [vmem:[#allocation2] sm:$0xff] %v87
    %v89 = vlaneseq
    %v90 = vshrl.u32 %v89, 7
    %vm91 = vcmp.lt.s32.totalorder %v90, 2
    %v92 = vsel %vm91, %v87, -inf
    %v93 = vrot.slane %v92, 4
    %v94 = vmax.f32 %v92, %v93
    %v95 = vrot.slane %v94, 2
    %v96 = vmax.f32 %v94, %v95
    %v97 = vrot.slane %v96, 1
    %v98 = vmax.f32 %v96, %v97
    %v99 = vsub.f32 %v92, %v98
    %v100 = vmul.f32 %v99, 1.442695
    %v101 = vpow.pop %v100
    %v102 = vrot.slane %v101, 4
    %v103 = vadd.f32 %v101, %v102
    %v104 = vrot.slane %v103, 2
    %v105 = vadd.f32 %v103, %v104
    %v106 = vrot.slane %v105, 1
    %v107 = vadd.f32 %v105, %v106
    %v108 = vlog2.pop %v107
    %v109 = vmul.f32 %v108, 0.6931472
    %v110 = vsub.f32 %v87, %v98
    %v111 = vsub.f32 %v110, %v109
    %v112 = vlaneseq
    %v113 = vand.u32 %v112, 127
    %vm114 = vcmp.lt.s32.totalorder %v113, 32
    %v115 = vsel %vm114, %v87, %v111
    %116 = vst [vmem:[#allocation8] sm:$0xff] %v115
    %v117 = vld [vmem:[#allocation2] sm:$0xff]
    %s118 = scalar_lea.vmem [#allocation3], 8
    %v119 = vld [vmem:[%s118] sm:$0xff]
    %120 = vmatpush.msra.mxu0 %v64
    %121 = vmatpush.msra.mxu0 %v63
    %122 = vmatpush.msra.mxu0 %v62
    %123 = vmatpush.msra.mxu0 %v61
    %124 = vmatpush.msra.mxu0 %v60
    %125 = vmatpush.msra.mxu0 %v59
    %126 = vmatpush.msra.mxu0 %v58
    %127 = vmatpush.msra.mxu0 %v57
    %128 = vmatpush.msra.mxu0 %v56
    %129 = vmatpush.msra.mxu0 %v55
    %130 = vmatpush.msra.mxu0 %v54
    %131 = vmatpush.msra.mxu0 %v53
    %132 = vmatpush.msra.mxu0 %v52
    %133 = vmatpush.msra.mxu0 %v51
    %134 = vmatpush.msra.mxu0 %v50
    %135 = vmatpush.msra.mxu0 %v49
    %136 = vmatmul.f32.gmra.mxu0 %v117
    %v137 = vpop.f32.mrf.mxu0
    %v138 = vadd.f32 0.0, %v137
    %139 = vdwg.mxu0
    %v140 = vadd.f32 %v119, %v138
    %141 = vst [vmem:[#allocation2] sm:$0xff] %v140
    %v142 = vsel %vm91, %v140, -inf
    %v143 = vrot.slane %v142, 4
    %v144 = vmax.f32 %v142, %v143
    %v145 = vrot.slane %v144, 2
    %v146 = vmax.f32 %v144, %v145
    %v147 = vrot.slane %v146, 1
    %v148 = vmax.f32 %v146, %v147
    %v149 = vsub.f32 %v142, %v148
    %v150 = vmul.f32 %v149, 1.442695
    %v151 = vpow.pop %v150
    %v152 = vrot.slane %v151, 4
    %v153 = vadd.f32 %v151, %v152
    %v154 = vrot.slane %v153, 2
    %v155 = vadd.f32 %v153, %v154
    %v156 = vrot.slane %v155, 1
    %v157 = vadd.f32 %v155, %v156
    %v158 = vlog2.pop %v157
    %v159 = vmul.f32 %v158, 0.6931472
    %v160 = vsub.f32 %v140, %v148
    %v161 = vsub.f32 %v160, %v159
    %v162 = vsel %vm114, %v140, %v161
    %s163 = scalar_lea.vmem [#allocation8], 8
    %164 = vst [vmem:[%s163] sm:$0xff] %v162
    %v165 = vld [vmem:[#allocation2] sm:$0xff]
    %s166 = scalar_lea.vmem [#allocation3], 16
    %v167 = vld [vmem:[%s166] sm:$0xff]
    %168 = vmatpush.msra.mxu0 %v64
    %169 = vmatpush.msra.mxu0 %v63
    %170 = vmatpush.msra.mxu0 %v62
    %171 = vmatpush.msra.mxu0 %v61
    %172 = vmatpush.msra.mxu0 %v60
    %173 = vmatpush.msra.mxu0 %v59
    %174 = vmatpush.msra.mxu0 %v58
    %175 = vmatpush.msra.mxu0 %v57
    %176 = vmatpush.msra.mxu0 %v56
    %177 = vmatpush.msra.mxu0 %v55
    %178 = vmatpush.msra.mxu0 %v54
    %179 = vmatpush.msra.mxu0 %v53
    %180 = vmatpush.msra.mxu0 %v52
    %181 = vmatpush.msra.mxu0 %v51
    %182 = vmatpush.msra.mxu0 %v50
    %183 = vmatpush.msra.mxu0 %v49
    %184 = vmatmul.f32.gmra.mxu0 %v165
    %v185 = vpop.f32.mrf.mxu0
    %v186 = vadd.f32 0.0, %v185
    %187 = vdwg.mxu0
    %v188 = vadd.f32 %v167, %v186
    %189 = vst [vmem:[#allocation2] sm:$0xff] %v188
    %v190 = vsel %vm91, %v188, -inf
    %v191 = vrot.slane %v190, 4
    %v192 = vmax.f32 %v190, %v191
    %v193 = vrot.slane %v192, 2
    %v194 = vmax.f32 %v192, %v193
    %v195 = vrot.slane %v194, 1
    %v196 = vmax.f32 %v194, %v195
    %v197 = vsub.f32 %v190, %v196
    %v198 = vmul.f32 %v197, 1.442695
    %v199 = vpow.pop %v198
    %v200 = vrot.slane %v199, 4
    %v201 = vadd.f32 %v199, %v200
    %v202 = vrot.slane %v201, 2
    %v203 = vadd.f32 %v201, %v202
    %v204 = vrot.slane %v203, 1
    %v205 = vadd.f32 %v203, %v204
    %v206 = vlog2.pop %v205
    %v207 = vmul.f32 %v206, 0.6931472
    %v208 = vsub.f32 %v188, %v196
    %v209 = vsub.f32 %v208, %v207
    %v210 = vsel %vm114, %v188, %v209
    %s211 = scalar_lea.vmem [#allocation8], 16
    %212 = vst [vmem:[%s211] sm:$0xff] %v210
    %v213 = vld [vmem:[#allocation2] sm:$0xff]
    %s214 = scalar_lea.vmem [#allocation3], 24
    %v215 = vld [vmem:[%s214] sm:$0xff]
    %216 = vmatpush.msra.mxu0 %v64
    %217 = vmatpush.msra.mxu0 %v63
    %218 = vmatpush.msra.mxu0 %v62
    %219 = vmatpush.msra.mxu0 %v61
    %220 = vmatpush.msra.mxu0 %v60
    %221 = vmatpush.msra.mxu0 %v59
    %222 = vmatpush.msra.mxu0 %v58
    %223 = vmatpush.msra.mxu0 %v57
    %224 = vmatpush.msra.mxu0 %v56
    %225 = vmatpush.msra.mxu0 %v55
    %226 = vmatpush.msra.mxu0 %v54
    %227 = vmatpush.msra.mxu0 %v53
    %228 = vmatpush.msra.mxu0 %v52
    %229 = vmatpush.msra.mxu0 %v51
    %230 = vmatpush.msra.mxu0 %v50
    %231 = vmatpush.msra.mxu0 %v49
    %232 = vmatmul.f32.gmra.mxu0 %v213
    %v233 = vpop.f32.mrf.mxu0
    %v234 = vadd.f32 0.0, %v233
    %235 = vdwg.mxu0
    %v236 = vadd.f32 %v215, %v234
    %237 = vst [vmem:[#allocation2] sm:$0xff] %v236
    %v238 = vsel %vm91, %v236, -inf
    %v239 = vrot.slane %v238, 4
    %v240 = vmax.f32 %v238, %v239
    %v241 = vrot.slane %v240, 2
    %v242 = vmax.f32 %v240, %v241
    %v243 = vrot.slane %v242, 1
    %v244 = vmax.f32 %v242, %v243
    %v245 = vsub.f32 %v238, %v244
    %v246 = vmul.f32 %v245, 1.442695
    %v247 = vpow.pop %v246
    %v248 = vrot.slane %v247, 4
    %v249 = vadd.f32 %v247, %v248
    %v250 = vrot.slane %v249, 2
    %v251 = vadd.f32 %v249, %v250
    %v252 = vrot.slane %v251, 1
    %v253 = vadd.f32 %v251, %v252
    %v254 = vlog2.pop %v253
    %v255 = vmul.f32 %v254, 0.6931472
    %v256 = vsub.f32 %v236, %v244
    %v257 = vsub.f32 %v256, %v255
    %v258 = vsel %vm114, %v236, %v257
    %s259 = scalar_lea.vmem [#allocation8], 24
    %260 = vst [vmem:[%s259] sm:$0xff] %v258
    %v261 = vld [vmem:[#allocation2] sm:$0xff]
    %s262 = scalar_lea.vmem [#allocation3], 32
    %v263 = vld [vmem:[%s262] sm:$0xff]
    %264 = vmatpush.msra.mxu0 %v64
    %265 = vmatpush.msra.mxu0 %v63
    %266 = vmatpush.msra.mxu0 %v62
    %267 = vmatpush.msra.mxu0 %v61
    %268 = vmatpush.msra.mxu0 %v60
    %269 = vmatpush.msra.mxu0 %v59
    %270 = vmatpush.msra.mxu0 %v58
    %271 = vmatpush.msra.mxu0 %v57
    %272 = vmatpush.msra.mxu0 %v56
    %273 = vmatpush.msra.mxu0 %v55
    %274 = vmatpush.msra.mxu0 %v54
    %275 = vmatpush.msra.mxu0 %v53
    %276 = vmatpush.msra.mxu0 %v52
    %277 = vmatpush.msra.mxu0 %v51
    %278 = vmatpush.msra.mxu0 %v50
    %279 = vmatpush.msra.mxu0 %v49
    %280 = vmatmul.f32.gmra.mxu0 %v261
    %v281 = vpop.f32.mrf.mxu0
    %v282 = vadd.f32 0.0, %v281
    %283 = vdwg.mxu0
    %v284 = vadd.f32 %v263, %v282
    %285 = vst [vmem:[#allocation2] sm:$0xff] %v284
    %v286 = vsel %vm91, %v284, -inf
    %v287 = vrot.slane %v286, 4
    %v288 = vmax.f32 %v286, %v287
    %v289 = vrot.slane %v288, 2
    %v290 = vmax.f32 %v288, %v289
    %v291 = vrot.slane %v290, 1
    %v292 = vmax.f32 %v290, %v291
    %v293 = vsub.f32 %v286, %v292
    %v294 = vmul.f32 %v293, 1.442695
    %v295 = vpow.pop %v294
    %v296 = vrot.slane %v295, 4
    %v297 = vadd.f32 %v295, %v296
    %v298 = vrot.slane %v297, 2
    %v299 = vadd.f32 %v297, %v298
    %v300 = vrot.slane %v299, 1
    %v301 = vadd.f32 %v299, %v300
    %v302 = vlog2.pop %v301
    %v303 = vmul.f32 %v302, 0.6931472
    %v304 = vsub.f32 %v284, %v292
    %v305 = vsub.f32 %v304, %v303
    %v306 = vsel %vm114, %v284, %v305
    %s307 = scalar_lea.vmem [#allocation8], 32
    %308 = vst [vmem:[%s307] sm:$0xff] %v306
    %v309 = vld [vmem:[#allocation2] sm:$0xff]
    %s310 = scalar_lea.vmem [#allocation3], 40
    %v311 = vld [vmem:[%s310] sm:$0xff]
    %312 = vmatpush.msra.mxu0 %v64
    %313 = vmatpush.msra.mxu0 %v63
    %314 = vmatpush.msra.mxu0 %v62
    %315 = vmatpush.msra.mxu0 %v61
    %316 = vmatpush.msra.mxu0 %v60
    %317 = vmatpush.msra.mxu0 %v59
    %318 = vmatpush.msra.mxu0 %v58
    %319 = vmatpush.msra.mxu0 %v57
    %320 = vmatpush.msra.mxu0 %v56
    %321 = vmatpush.msra.mxu0 %v55
    %322 = vmatpush.msra.mxu0 %v54
    %323 = vmatpush.msra.mxu0 %v53
    %324 = vmatpush.msra.mxu0 %v52
    %325 = vmatpush.msra.mxu0 %v51
    %326 = vmatpush.msra.mxu0 %v50
    %327 = vmatpush.msra.mxu0 %v49
    %328 = vmatmul.f32.gmra.mxu0 %v309
    %v329 = vpop.f32.mrf.mxu0
    %v330 = vadd.f32 0.0, %v329
    %331 = vdwg.mxu0
    %v332 = vadd.f32 %v311, %v330
    %333 = vst [vmem:[#allocation2] sm:$0xff] %v332
    %v334 = vsel %vm91, %v332, -inf
    %v335 = vrot.slane %v334, 4
    %v336 = vmax.f32 %v334, %v335
    %v337 = vrot.slane %v336, 2
    %v338 = vmax.f32 %v336, %v337
    %v339 = vrot.slane %v338, 1
    %v340 = vmax.f32 %v338, %v339
    %v341 = vsub.f32 %v334, %v340
    %v342 = vmul.f32 %v341, 1.442695
    %v343 = vpow.pop %v342
    %v344 = vrot.slane %v343, 4
    %v345 = vadd.f32 %v343, %v344
    %v346 = vrot.slane %v345, 2
    %v347 = vadd.f32 %v345, %v346
    %v348 = vrot.slane %v347, 1
    %v349 = vadd.f32 %v347, %v348
    %v350 = vlog2.pop %v349
    %v351 = vmul.f32 %v350, 0.6931472
    %v352 = vsub.f32 %v332, %v340
    %v353 = vsub.f32 %v352, %v351
    %v354 = vsel %vm114, %v332, %v353
    %s355 = scalar_lea.vmem [#allocation8], 40
    %356 = vst [vmem:[%s355] sm:$0xff] %v354
    %v357 = vld [vmem:[#allocation2] sm:$0xff]
    %s358 = scalar_lea.vmem [#allocation3], 48
    %v359 = vld [vmem:[%s358] sm:$0xff]
    %360 = vmatpush.msra.mxu0 %v64
    %361 = vmatpush.msra.mxu0 %v63
    %362 = vmatpush.msra.mxu0 %v62
    %363 = vmatpush.msra.mxu0 %v61
    %364 = vmatpush.msra.mxu0 %v60
    %365 = vmatpush.msra.mxu0 %v59
    %366 = vmatpush.msra.mxu0 %v58
    %367 = vmatpush.msra.mxu0 %v57
    %368 = vmatpush.msra.mxu0 %v56
    %369 = vmatpush.msra.mxu0 %v55
    %370 = vmatpush.msra.mxu0 %v54
    %371 = vmatpush.msra.mxu0 %v53
    %372 = vmatpush.msra.mxu0 %v52
    %373 = vmatpush.msra.mxu0 %v51
    %374 = vmatpush.msra.mxu0 %v50
    %375 = vmatpush.msra.mxu0 %v49
    %376 = vmatmul.f32.gmra.mxu0 %v357
    %v377 = vpop.f32.mrf.mxu0
    %v378 = vadd.f32 0.0, %v377
    %379 = vdwg.mxu0
    %v380 = vadd.f32 %v359, %v378
    %381 = vst [vmem:[#allocation2] sm:$0xff] %v380
    %v382 = vsel %vm91, %v380, -inf
    %v383 = vrot.slane %v382, 4
    %v384 = vmax.f32 %v382, %v383
    %v385 = vrot.slane %v384, 2
    %v386 = vmax.f32 %v384, %v385
    %v387 = vrot.slane %v386, 1
    %v388 = vmax.f32 %v386, %v387
    %v389 = vsub.f32 %v382, %v388
    %v390 = vmul.f32 %v389, 1.442695
    %v391 = vpow.pop %v390
    %v392 = vrot.slane %v391, 4
    %v393 = vadd.f32 %v391, %v392
    %v394 = vrot.slane %v393, 2
    %v395 = vadd.f32 %v393, %v394
    %v396 = vrot.slane %v395, 1
    %v397 = vadd.f32 %v395, %v396
    %v398 = vlog2.pop %v397
    %v399 = vmul.f32 %v398, 0.6931472
    %v400 = vsub.f32 %v380, %v388
    %v401 = vsub.f32 %v400, %v399
    %v402 = vsel %vm114, %v380, %v401
    %s403 = scalar_lea.vmem [#allocation8], 48
    %404 = vst [vmem:[%s403] sm:$0xff] %v402
    %v405 = vld [vmem:[#allocation2] sm:$0xff]
    %s406 = scalar_lea.vmem [#allocation3], 56
    %v407 = vld [vmem:[%s406] sm:$0xff]
    %408 = vmatpush.msra.mxu0 %v64
    %409 = vmatpush.msra.mxu0 %v63
    %410 = vmatpush.msra.mxu0 %v62
    %411 = vmatpush.msra.mxu0 %v61
    %412 = vmatpush.msra.mxu0 %v60
    %413 = vmatpush.msra.mxu0 %v59
    %414 = vmatpush.msra.mxu0 %v58
    %415 = vmatpush.msra.mxu0 %v57
    %416 = vmatpush.msra.mxu0 %v56
    %417 = vmatpush.msra.mxu0 %v55
    %418 = vmatpush.msra.mxu0 %v54
    %419 = vmatpush.msra.mxu0 %v53
    %420 = vmatpush.msra.mxu0 %v52
    %421 = vmatpush.msra.mxu0 %v51
    %422 = vmatpush.msra.mxu0 %v50
    %423 = vmatpush.msra.mxu0 %v49
    %424 = vmatmul.f32.gmra.mxu0 %v405
    %v425 = vpop.f32.mrf.mxu0
    %v426 = vadd.f32 0.0, %v425
    %427 = vdwg.mxu0
    %v428 = vadd.f32 %v407, %v426
    %429 = vst [vmem:[#allocation2] sm:$0xff] %v428
    %v430 = vsel %vm91, %v428, -inf
    %v431 = vrot.slane %v430, 4
    %v432 = vmax.f32 %v430, %v431
    %v433 = vrot.slane %v432, 2
    %v434 = vmax.f32 %v432, %v433
    %v435 = vrot.slane %v434, 1
    %v436 = vmax.f32 %v434, %v435
    %v437 = vsub.f32 %v430, %v436
    %v438 = vmul.f32 %v437, 1.442695
    %v439 = vpow.pop %v438
    %v440 = vrot.slane %v439, 4
    %v441 = vadd.f32 %v439, %v440
    %v442 = vrot.slane %v441, 2
    %v443 = vadd.f32 %v441, %v442
    %v444 = vrot.slane %v443, 1
    %v445 = vadd.f32 %v443, %v444
    %v446 = vlog2.pop %v445
    %v447 = vmul.f32 %v446, 0.6931472
    %v448 = vsub.f32 %v428, %v436
    %v449 = vsub.f32 %v448, %v447
    %v450 = vsel %vm114, %v428, %v449
    %s451 = scalar_lea.vmem [#allocation8], 56
    %452 = vst [vmem:[%s451] sm:$0xff] %v450
    // Predicated region
    $region22: #{tpu_custom_call.1} parent=1 // pred_check
      _
    $region23: #{tpu_custom_call.1} parent=1 // pred_check_branch
      %454 = sbr.rel (0) target = $region25
    $region24: #{tpu_custom_call.1} parent=1 // pred_region
      %456 = vsyncadd [#allocation5], 0
      %s457 = sshll.u32 [#allocation8], 4
      %s458 = int_to_ptr.vmem [resolvable:$true] %s457
      %s459 = sshll.u32 %s2, 4
      %s460 = int_to_ptr.hbm [resolvable:$true] %s459
      %465 = dma.vmem_to_hbm [thread:$0]  %s458, 1024, %s460, [#allocation5], 128, 128, 8
    $region25: #{tpu_custom_call.1} parent=1 // pred_fallthru
      _
    // Predicated region
    $region26: #{tpu_custom_call.1} parent=1 // pred_check
      _
    $region27: #{tpu_custom_call.1} parent=1 // pred_check_branch
      %467 = sbr.rel (0) target = $region29
    $region28: #{tpu_custom_call.1} parent=1 // pred_region
      %469 = dma.done [#allocation5], 1024
    $region29: #{tpu_custom_call.1} parent=1 // pred_fallthru
      _
    %470 = vsyncpa [#allocation4], 1
    %471 = vsyncpa [#allocation7], 1
    %472 = vsyncpa [#allocation5], 1

</llo_original>
